<compile_context>
chip_gen: v5e
topology: v5e:2x2
jax: 0.10.0
libtpu: 0.0.40
codegen_flags: <defaults>
</compile_context>

<pallas_src>
import jax
import jax.numpy as jnp
from jax import lax
from jax.experimental import pallas as pl
from jax.experimental.pallas import tpu as pltpu

BN_EPS = 1e-5
LANE = 128


def _fc_bn_relu_kernel(x_ref, w_ref, gamma_ref, beta_ref, o_ref):
    # (B, Cin) bf16  @  (Cin, TILE_N) bf16  -> f32 accumulate on the MXU.
    y = jnp.dot(x_ref[...], w_ref[...], preferred_element_type=jnp.float32)

    # BatchNorm1d (training mode): single-pass per-feature stats over the batch.
    inv_b = 1.0 / y.shape[0]
    sum_y = jnp.sum(y, axis=0, keepdims=True)
    sum_y2 = jnp.sum(y * y, axis=0, keepdims=True)
    mean = sum_y * inv_b
    # Biased variance; clamp: E[y^2]-E[y]^2 can go slightly negative -> NaN in rsqrt.
    var = jnp.maximum(sum_y2 * inv_b - mean * mean, 0.0)

    # Fold gamma into the rsqrt (EUP slot) and mean/beta into one shift so the
    # (B, TILE_N) epilogue is a single mul-add + max.
    scale = gamma_ref[...] * lax.rsqrt(var + BN_EPS)     # (1, TILE_N)
    shift = beta_ref[...] - mean * scale                 # (1, TILE_N)
    o_ref[...] = jnp.maximum(y * scale + shift, 0.0).astype(o_ref.dtype)


def _vmem_budget_bytes():
    """Generation-aware VMEM budget (v5e/v6e: 128 MiB, v7x: 64 MiB per core)."""
    try:
        cap = int(getattr(pltpu.get_tpu_info(), "vmem_capacity_bytes", 64 << 20))
    except Exception:  # non-TPU tracing / older runtimes
        cap = 64 << 20
    # Leave headroom for compiler scratch / semaphores / pipeline overhead.
    return max(16 << 20, int(cap * 0.75))


def fc_forward(x, weight, bias, gamma, beta, *, tile_n=None):
    """x: (B, Cin) f32. weight: (Cout, Cin) as in nn.Linear. Returns (B, Cout) f32."""
    del bias  # mathematically cancelled by training-mode BN mean subtraction
    B, Cin = x.shape
    Cout = weight.shape[0]

    # Pre-transpose once (amortized: weights are reused across calls).
    wT = weight.T  # (Cin, Cout)

    # Lane-dense output: pad Cout up to a multiple of 128, slice back afterwards.
    Cp = ((Cout + LANE - 1) // LANE) * LANE
    if Cp != Cout:
        wT = jnp.pad(wT, ((0, 0), (0, Cp - Cout)))
        # gamma MUST be zero-padded: padded columns then get scale == 0.
        gamma = jnp.pad(gamma, (0, Cp - Cout))
        beta = jnp.pad(beta, (0, Cp - Cout))

    # bf16 matmul operands; BN params stay f32.
    x_mm = x.astype(jnp.bfloat16)
    w_mm = wT.astype(jnp.bfloat16)
    g2 = gamma.reshape(1, Cp).astype(jnp.float32)
    be2 = beta.reshape(1, Cp).astype(jnp.float32)

    out_itemsize = jnp.dtype(x.dtype).itemsize
    budget = _vmem_budget_bytes()

    def vmem_bytes(tn):
        return (2 * B * Cin                    # x (bf16), resident
                + 2 * (2 * tn * Cin)           # weight tile (bf16), double-buffered
                + 2 * (out_itemsize * B * tn)  # out tile, double-buffered
                + 2 * 4 * tn                   # gamma/beta tiles (f32)
                + 4 * B * tn)                  # in-kernel f32 matmul result

    if tile_n is None:
        # Prefer the whole strip (grid=(1,)) -> no per-step overhead; otherwise the
        # largest lane-dense divisor of Cp that fits the VMEM budget.
        candidates = [Cp] + [t for t in (4096, 2048, 1024, 512, 256, 128)
                             if t < Cp and Cp % t == 0]
        tile_n = 128
        for t in candidates:
            if vmem_bytes(t) <= budget:
                tile_n = t
                break
    tile_n = min(tile_n, Cp)
    assert Cp % tile_n == 0
    grid = (Cp // tile_n,)

    cost = pl.CostEstimate(
        flops=2 * B * Cin * Cp,
        transcendentals=Cp,
        bytes_accessed=2 * (B * Cin + Cin * Cp) + 4 * (B * Cp + 2 * Cp),
    )

    out = pl.pallas_call(
        _fc_bn_relu_kernel,
        out_shape=jax.ShapeDtypeStruct((B, Cp), x.dtype),
        grid_spec=pltpu.PrefetchScalarGridSpec(
            num_scalar_prefetch=0,
            grid=grid,
            in_specs=[
                pl.BlockSpec((B, Cin), lambda j: (0, 0)),        # x: whole batch, resident
                pl.BlockSpec((Cin, tile_n), lambda j: (0, j)),   # pre-transposed weight tile
                pl.BlockSpec((1, tile_n), lambda j: (0, j)),     # gamma tile
                pl.BlockSpec((1, tile_n), lambda j: (0, j)),     # beta tile
            ],
            out_specs=pl.BlockSpec((B, tile_n), lambda j: (0, j)),
        ),
        compiler_params=pltpu.CompilerParams(
            dimension_semantics=("parallel",),
            vmem_limit_bytes=budget,   # explicit: v5e scoped default is only 16 MiB
        ),
        cost_estimate=cost,
    )(x_mm, w_mm, g2, be2)

    return out[:, :Cout] if Cp != Cout else out


def _reference_f32(x, weight, bias, gamma, beta):
    """Full-precision reference of the PyTorch module (training-mode BN)."""
    y = x @ weight.T + bias
    mean = jnp.mean(y, axis=0, keepdims=True)
    var = jnp.mean((y - mean) ** 2, axis=0, keepdims=True)
    y_hat = (y - mean) / jnp.sqrt(var + BN_EPS)
    return jnp.maximum(y_hat * gamma + beta, 0.0)


def _reference_bf16(x, weight, bias, gamma, beta):
    """Same math with a bf16 matmul (matches the kernel's compute dtype)."""
    y = jnp.dot(x.astype(jnp.bfloat16), weight.T.astype(jnp.bfloat16),
                preferred_element_type=jnp.float32) + bias
    mean = jnp.mean(y, axis=0, keepdims=True)
    var = jnp.mean((y - mean) ** 2, axis=0, keepdims=True)
    y_hat = (y - mean) / jnp.sqrt(var + BN_EPS)
    return jnp.maximum(y_hat * gamma + beta, 0.0)


if __name__ == "__main__":
    B, input_dim, output_dim = 8, 32, 128

    key = jax.random.PRNGKey(0)
    kx, kw, kb, kg, kbeta = jax.random.split(key, 5)

    x = jax.random.normal(kx, (B, input_dim), dtype=jnp.float32)

    # nn.Linear default init: U(-1/sqrt(in), 1/sqrt(in))
    bound = 1.0 / (input_dim ** 0.5)
    weight = jax.random.uniform(kw, (output_dim, input_dim), jnp.float32, -bound, bound)
    bias = jax.random.uniform(kb, (output_dim,), jnp.float32, -bound, bound)

    # BatchNorm1d affine params (defaults ones/zeros; perturb to exercise the path).
    gamma = 1.0 + 0.1 * jax.random.normal(kg, (output_dim,), dtype=jnp.float32)
    beta = 0.1 * jax.random.normal(kbeta, (output_dim,), dtype=jnp.float32)

    out = fc_forward(x, weight, bias, gamma, beta)
    out = jax.block_until_ready(out)
    assert out.shape == (B, output_dim)

    ref_bf16 = _reference_bf16(x, weight, bias, gamma, beta)
    ref_f32 = _reference_f32(x, weight, bias, gamma, beta)
    assert jnp.allclose(out, ref_bf16, atol=1e-3, rtol=1e-3), "mismatch vs bf16 reference"
    assert jnp.allclose(out, ref_f32, atol=3e-2, rtol=3e-2), "mismatch vs f32 reference"

    print("KERNEL_OK")
</pallas_src>

<mosaic_0001>
module attributes {stable_mosaic.version = 11 : i64} {
  func.func @_fc_bn_relu_kernel(%arg0: i32, %arg1: memref<8x32xbf16, #tpu.memory_space<vmem>>, %arg2: memref<32x128xbf16, #tpu.memory_space<vmem>>, %arg3: memref<1x128xf32, #tpu.memory_space<vmem>>, %arg4: memref<1x128xf32, #tpu.memory_space<vmem>>, %arg5: memref<8x128xf32, #tpu.memory_space<vmem>>) attributes {dimension_semantics = [#tpu.dimension_semantics<parallel>], iteration_bounds = array<i64: 1>, scalar_prefetch = 0 : i64, scratch_operands = 0 : i64, tpu.core_type = #tpu.core_type<tc>, window_params = [{pipeline_mode = #tpu.pipeline_mode<synchronous>, transform_indices = @transform_0, window_bounds = array<i64: 8, 32>}, {transform_indices = @transform_1, window_bounds = array<i64: 32, 128>}, {transform_indices = @transform_2, window_bounds = array<i64: 1, 128>}, {transform_indices = @transform_3, window_bounds = array<i64: 1, 128>}, {transform_indices = @transform_4, window_bounds = array<i64: 8, 128>}]} {
    %c0 = arith.constant 0 : index
    %c0_0 = arith.constant 0 : index
    %0 = vector.load %arg1[%c0, %c0_0] : memref<8x32xbf16, #tpu.memory_space<vmem>>, vector<8x32xbf16>
    %c0_1 = arith.constant 0 : index
    %c0_2 = arith.constant 0 : index
    %1 = vector.load %arg2[%c0_1, %c0_2] : memref<32x128xbf16, #tpu.memory_space<vmem>>, vector<32x128xbf16>
    %cst = arith.constant dense<0.000000e+00> : vector<8x128xf32>
    %2 = tpu.matmul %0, %1, %cst {dimension_numbers = #tpu.dot_dimension_numbers<[1], [0], [0], [1], [0, 0, 1, 1], [], []>} : vector<8x32xbf16>, vector<32x128xbf16>, vector<8x128xf32> -> vector<8x128xf32>
    %cst_3 = arith.constant dense<0.000000e+00> : vector<128xf32>
    %3 = vector.multi_reduction <add>, %2, %cst_3 [0] : vector<8x128xf32> to vector<128xf32>
    %4 = vector.shape_cast %3 : vector<128xf32> to vector<1x128xf32>
    %5 = arith.mulf %2, %2 : vector<8x128xf32>
    %cst_4 = arith.constant dense<0.000000e+00> : vector<128xf32>
    %6 = vector.multi_reduction <add>, %5, %cst_4 [0] : vector<8x128xf32> to vector<128xf32>
    %7 = vector.shape_cast %6 : vector<128xf32> to vector<1x128xf32>
    %cst_5 = arith.constant 1.250000e-01 : f32
    %8 = vector.broadcast %cst_5 : f32 to vector<1x128xf32>
    %9 = arith.mulf %4, %8 : vector<1x128xf32>
    %cst_6 = arith.constant 1.250000e-01 : f32
    %10 = vector.broadcast %cst_6 : f32 to vector<1x128xf32>
    %11 = arith.mulf %7, %10 : vector<1x128xf32>
    %12 = arith.mulf %9, %9 : vector<1x128xf32>
    %13 = arith.subf %11, %12 : vector<1x128xf32>
    %cst_7 = arith.constant 0.000000e+00 : f32
    %14 = vector.broadcast %cst_7 : f32 to vector<1x128xf32>
    %15 = arith.maximumf %13, %14 : vector<1x128xf32>
    %c0_8 = arith.constant 0 : index
    %c0_9 = arith.constant 0 : index
    %16 = vector.load %arg3[%c0_8, %c0_9] : memref<1x128xf32, #tpu.memory_space<vmem>>, vector<1x128xf32>
    %cst_10 = arith.constant 9.99999974E-6 : f32
    %17 = vector.broadcast %cst_10 : f32 to vector<1x128xf32>
    %18 = arith.addf %15, %17 : vector<1x128xf32>
    %19 = math.rsqrt %18 : vector<1x128xf32>
    %20 = arith.mulf %16, %19 : vector<1x128xf32>
    %c0_11 = arith.constant 0 : index
    %c0_12 = arith.constant 0 : index
    %21 = vector.load %arg4[%c0_11, %c0_12] : memref<1x128xf32, #tpu.memory_space<vmem>>, vector<1x128xf32>
    %22 = arith.mulf %9, %20 : vector<1x128xf32>
    %23 = arith.subf %21, %22 : vector<1x128xf32>
    %24 = vector.broadcast %20 : vector<1x128xf32> to vector<8x128xf32>
    %25 = arith.mulf %2, %24 : vector<8x128xf32>
    %26 = vector.broadcast %23 : vector<1x128xf32> to vector<8x128xf32>
    %27 = arith.addf %25, %26 : vector<8x128xf32>
    %cst_13 = arith.constant 0.000000e+00 : f32
    %28 = vector.broadcast %cst_13 : f32 to vector<8x128xf32>
    %29 = arith.maximumf %27, %28 : vector<8x128xf32>
    %c0_14 = arith.constant 0 : index
    %c0_15 = arith.constant 0 : index
    %30 = vector.load %arg5[%c0_14, %c0_15] : memref<8x128xf32, #tpu.memory_space<vmem>>, vector<8x128xf32>
    tpu.vector_store %arg5[%c0_14, %c0_15], %29 {strides = array<i32>} : memref<8x128xf32, #tpu.memory_space<vmem>>, vector<8x128xf32>,
    return
  }
  func.func @transform_0(%arg0: i32) -> (i32, i32) {
    %c0_i32 = arith.constant 0 : i32
    %c0_i32_0 = arith.constant 0 : i32
    %c0_i32_1 = arith.constant 0 : i32
    return %c0_i32, %c0_i32_0 : i32, i32
  }
  func.func @transform_1(%arg0: i32) -> (i32, i32) {
    %c0_i32 = arith.constant 0 : i32
    %c0_i32_0 = arith.constant 0 : i32
    return %c0_i32, %arg0 : i32, i32
  }
  func.func @transform_2(%arg0: i32) -> (i32, i32) {
    %c0_i32 = arith.constant 0 : i32
    %c0_i32_0 = arith.constant 0 : i32
    return %c0_i32, %arg0 : i32, i32
  }
  func.func @transform_3(%arg0: i32) -> (i32, i32) {
    %c0_i32 = arith.constant 0 : i32
    %c0_i32_0 = arith.constant 0 : i32
    return %c0_i32, %arg0 : i32, i32
  }
  func.func @transform_4(%arg0: i32) -> (i32, i32) {
    %c0_i32 = arith.constant 0 : i32
    %c0_i32_0 = arith.constant 0 : i32
    return %c0_i32, %arg0 : i32, i32
  }
}

</mosaic_0001>

<llo_original>
// kernel: tpu_custom_call.1
$region0: #{tpu_custom_call.1}
  #allocation0 [shape = 'u32[]', space=smem, size = 0x4, offset = 0x4, fixed_abs, tag = 'smem constant byte address 0x4 - core index']
  #allocation1 [shape = 'u32[72,128]{1,0:T(1,128)}', space=vmem, size = 0x9000, scoped, tag = 'internal scratch']
  %s0 = inlined_call_operand.hbm [shape: bf16[8,32], index: 0, kind: input, shape index: {}]
  %s1 = inlined_call_operand.hbm [shape: bf16[32,128], index: 1, kind: input, shape index: {}]
  %s2 = inlined_call_operand.vmem [shape: f32[1,128], index: 2, kind: input, shape index: {}]
  %s3 = inlined_call_operand.vmem [shape: f32[1,128], index: 3, kind: input, shape index: {}]
  %s4 = inlined_call_operand.hbm [shape: f32[8,128], index: 4, kind: output, shape index: {}]
  %s5 = sld [smem:[#allocation0]]
  $region34: #{tpu_custom_call.1} parent=0
    _
  %s7 = ssub.s32 1, %s5
  %s8 = scalar_select 0, %s7, %s5
  $region1: #{tpu_custom_call.1} parent=0
    #allocation2 [shape = 'u8[2048]{0}', space=vmem, size = 0x800, scoped, tag = 'input window, operand 0, single buffered']
    #allocation3 [shape = 's32[1]{0}', space=sflag, size = 0x4, scoped, tag = 'scoped memory for tpu_custom_call.1']
    #allocation4 [shape = 's32[1]{0}', space=sflag, size = 0x4, scoped, tag = 'scoped memory for tpu_custom_call.1']
    #allocation5 [shape = 'u8[8192]{0}', space=vmem, size = 0x2000, scoped, tag = 'input window, operand 1, single buffered']
    #allocation6 [shape = 's32[1]{0}', space=sflag, size = 0x4, scoped, tag = 'scoped memory for tpu_custom_call.1']
    #allocation7 [shape = 'u8[4096]{0}', space=vmem, size = 0x1000, scoped, tag = 'output window, operand 0, single buffered']
    %9 = vsyncpa [#allocation3], 0
    %10 = vsyncpa [#allocation6], 0
    %11 = vsyncpa [#allocation4], 0
    // Predicated region
    $region2: #{tpu_custom_call.1} parent=1 // pred_check
      _
    $region3: #{tpu_custom_call.1} parent=1 // pred_check_branch
      %13 = sbr.rel (0) target = $region5
    $region4: #{tpu_custom_call.1} parent=1 // pred_region
      %15 = vsyncadd [#allocation3], 0
      %s17 = sshll.u32 %s0, 4
      %s18 = int_to_ptr.hbm [resolvable:$true] %s17
      %s19 = sshll.u32 [#allocation2], 4
      %s20 = int_to_ptr.vmem [resolvable:$true] %s19
      %22 = dma.hbm_to_vmem [thread:$0]  %s18, 64, %s20, [#allocation3]
    $region5: #{tpu_custom_call.1} parent=1 // pred_fallthru
      _
    // Predicated region
    $region6: #{tpu_custom_call.1} parent=1 // pred_check
      _
    $region7: #{tpu_custom_call.1} parent=1 // pred_check_branch
      %24 = sbr.rel (0) target = $region9
    $region8: #{tpu_custom_call.1} parent=1 // pred_region
      %26 = vsyncadd [#allocation6], 0
      %s27 = sshll.u32 %s1, 4
      %s28 = int_to_ptr.hbm [resolvable:$true] %s27
      %s29 = sshll.u32 [#allocation5], 4
      %s30 = int_to_ptr.vmem [resolvable:$true] %s29
      %35 = dma.hbm_to_vmem [thread:$0]  %s28, 256, %s30, [#allocation6], 64, 64, 4
    $region9: #{tpu_custom_call.1} parent=1 // pred_fallthru
      _
    // Predicated region
    $region10: #{tpu_custom_call.1} parent=1 // pred_check
      _
    $region11: #{tpu_custom_call.1} parent=1 // pred_check_branch
      %37 = sbr.rel (0) target = $region13
    $region12: #{tpu_custom_call.1} parent=1 // pred_region
      _
    $region13: #{tpu_custom_call.1} parent=1 // pred_fallthru
      _
    // Predicated region
    $region14: #{tpu_custom_call.1} parent=1 // pred_check
      _
    $region15: #{tpu_custom_call.1} parent=1 // pred_check_branch
      %39 = sbr.rel (0) target = $region17
    $region16: #{tpu_custom_call.1} parent=1 // pred_region
      _
    $region17: #{tpu_custom_call.1} parent=1 // pred_fallthru
      _
    // Predicated region
    $region18: #{tpu_custom_call.1} parent=1 // pred_check
      _
    $region19: #{tpu_custom_call.1} parent=1 // pred_check_branch
      %41 = sbr.rel (0) target = $region21
    $region20: #{tpu_custom_call.1} parent=1 // pred_region
      %43 = dma.done [#allocation3], 64
    $region21: #{tpu_custom_call.1} parent=1 // pred_fallthru
      _
    // Predicated region
    $region22: #{tpu_custom_call.1} parent=1 // pred_check
      _
    $region23: #{tpu_custom_call.1} parent=1 // pred_check_branch
      %45 = sbr.rel (0) target = $region25
    $region24: #{tpu_custom_call.1} parent=1 // pred_region
      %47 = dma.done [#allocation6], 256
    $region25: #{tpu_custom_call.1} parent=1 // pred_fallthru
      _
    %v49 = vld [vmem:[#allocation2] sm:$0xf]
    %v50 = vld [vmem:[#allocation5] sm:$0xf]
    %v51 = vld [vmem:[#allocation5 + $0x4] sm:$0xf]
    %v52 = vld [vmem:[#allocation5 + $0x8] sm:$0xf]
    %v53 = vld [vmem:[#allocation5 + $0xc] sm:$0xf]
    %v58 = vunpack.c.l.b16 %v50
    %v59 = vunpack.c.l.b16 %v51
    %v60 = vunpack.c.l.b16 %v52
    %v61 = vunpack.c.l.b16 %v53
    %v62 = vpack.c.b16 %v59, %v58
    %v63 = vpack.c.b16 %v61, %v60
    %vm66 = vcmask 261120
    %v68 = vsel %vm66, %v49, 0
    %70 = vmatpush.bf16.msra.mxu0 0
    %71 = vmatpush.bf16.msra.mxu0 0
    %72 = vmatpush.bf16.msra.mxu0 0
    %73 = vmatpush.bf16.msra.mxu0 0
    %74 = vmatpush.bf16.msra.mxu0 0
    %75 = vmatpush.bf16.msra.mxu0 0
    %76 = vmatpush.bf16.msra.mxu0 %v63
    %77 = vmatpush.bf16.msra.mxu0 %v62
    %78 = vmatmul.bf16.gmra.mxu0 %v68
    %v79 = vpop.f32.mrf.mxu0
    %v80 = vadd.f32 0.0, %v79
    %v81 = vpop.f32.mrf.mxu0
    %82 = vdwg.mxu0
    %v83 = vrot.slane %v80, 4
    %v84 = vadd.f32 %v80, %v83
    %v85 = vrot.slane %v84, 2
    %v86 = vadd.f32 %v84, %v85
    %v87 = vrot.slane %v86, 1
    %v88 = vadd.f32 %v86, %v87
    %v89 = vmul.f32 %v80, %v80
    %v90 = vrot.slane %v89, 4
    %v91 = vadd.f32 %v89, %v90
    %v92 = vrot.slane %v91, 2
    %v93 = vadd.f32 %v91, %v92
    %v94 = vrot.slane %v93, 1
    %v95 = vadd.f32 %v93, %v94
    %v96 = vmul.f32 %v88, 0.125
    %v97 = vmul.f32 %v95, 0.125
    %v98 = vmul.f32 %v96, %v96
    %v99 = vsub.f32 %v97, %v98
    %v100 = vmax.f32 %v99, 0.0
    %v101 = vld [vmem:[%s2] sm:$0x1]
    %v102 = vadd.f32 %v100, 1e-05
    %v103 = vrsqrt.pop %v102
    %v104 = vmul.f32 %v103, %v102
    %v105 = vmul.f32 %v104, %v103
    %v106 = vmul.f32 0.5, %v105
    %v107 = vsub.f32 1.5, %v106
    %v108 = vmul.f32 %v103, %v107
    %vm109 = vweird.f32 %v102
    %vm110 = vweird.f32 %v103
    %vm111 = vmor %vm109, %vm110
    %v112 = vsel %vm111, %v103, %v108
    %v113 = vmul.f32 %v101, %v112
    %v114 = vld [vmem:[%s3] sm:$0x1]
    %v115 = vmul.f32 %v96, %v113
    %v116 = vsub.f32 %v114, %v115
    %v118 = vperm.slane %v113, 0
    %v120 = vmul.f32 %v80, %v118
    %v122 = vperm.slane %v116, 0
    %v124 = vadd.f32 %v120, %v122
    %v125 = vmax.f32 %v124, 0.0
    %126 = vst [vmem:[#allocation7] sm:$0xff] %v125
    // Predicated region
    $region26: #{tpu_custom_call.1} parent=1 // pred_check
      _
    $region27: #{tpu_custom_call.1} parent=1 // pred_check_branch
      %128 = sbr.rel (0) target = $region29
    $region28: #{tpu_custom_call.1} parent=1 // pred_region
      %130 = vsyncadd [#allocation4], 0
      %s132 = sshll.u32 [#allocation7], 4
      %s133 = int_to_ptr.vmem [resolvable:$true] %s132
      %s134 = sshll.u32 %s4, 4
      %s135 = int_to_ptr.hbm [resolvable:$true] %s134
      %137 = dma.vmem_to_hbm [thread:$0]  %s133, 128, %s135, [#allocation4]
    $region29: #{tpu_custom_call.1} parent=1 // pred_fallthru
      _
    // Predicated region
    $region30: #{tpu_custom_call.1} parent=1 // pred_check
      _
    $region31: #{tpu_custom_call.1} parent=1 // pred_check_branch
      %139 = sbr.rel (0) target = $region33
    $region32: #{tpu_custom_call.1} parent=1 // pred_region
      %141 = dma.done [#allocation4], 128
    $region33: #{tpu_custom_call.1} parent=1 // pred_fallthru
      _
    %142 = vsyncpa [#allocation3], 1
    %143 = vsyncpa [#allocation6], 1
    %144 = vsyncpa [#allocation4], 1

</llo_original>
